<compile_context>
chip_gen: v5e
topology: v5e:2x2
jax: 0.10.0
libtpu: 0.0.40
codegen_flags: <defaults>
</compile_context>

<pallas_src>
import functools
import math

import jax
import jax.numpy as jnp
from jax.experimental import pallas as pl
from jax.experimental.pallas import tpu as pltpu


def _make_pe(d_model: int, max_len: int = 5000) -> jnp.ndarray:
    """Reference sinusoidal buffer (matches PyTorch register_buffer), shape (max_len, 1, d_model)."""
    position = jnp.arange(0, max_len, dtype=jnp.float32)[:, None]
    div_term = jnp.exp(
        jnp.arange(0, d_model, 2, dtype=jnp.float32) * (-math.log(10000.0) / d_model)
    )
    angles = position * div_term
    pe = jnp.zeros((max_len, d_model), dtype=jnp.float32)
    pe = pe.at[:, 0::2].set(jnp.sin(angles))
    pe = pe.at[:, 1::2].set(jnp.cos(angles))
    return pe[:, None, :]


def _sublane_multiple(dtype) -> int:
    return {4: 8, 2: 16, 1: 32}.get(jnp.dtype(dtype).itemsize, 8)


def _pos_enc_kernel_flat(x_ref, o_ref, *, d_model: int, neg_log_10000_over_d: float):
    """Flat path: x_ref/o_ref are (ts, tbd) tiles of the (S, B*D) slab.

    pe is generated in-kernel (no HBM read for it):
      d     = absolute_lane % d_model
      freq  = exp(2*(d//2) * (-ln(10000)/d_model))          (lane-only, hoisted)
      pe    = sin(pos*freq + (pi/2)*(d%2))                  (cos == sin(x+pi/2))
    Exactly one EUP transcendental per streamed element.
    """
    ts, tbd = x_ref.shape
    # Lane-only quantities, computed once per tile on a (1, tbd) row.
    lane = pl.program_id(1) * tbd + jax.lax.broadcasted_iota(jnp.int32, (1, tbd), 1)
    d = lane % d_model
    parity = d % 2
    freq = jnp.exp((d - parity).astype(jnp.float32) * neg_log_10000_over_d)   # (1, tbd)
    phase = (0.5 * math.pi) * parity.astype(jnp.float32)                      # (1, tbd)
    # Absolute sequence position per sublane row.
    row = jax.lax.broadcasted_iota(jnp.int32, (ts, 1), 0)
    pos = (pl.program_id(0) * ts + row).astype(jnp.float32)                   # (ts, 1)
    pe = jnp.sin(pos * freq + phase)                                          # (ts, tbd)
    o_ref[...] = (x_ref[...] + pe).astype(o_ref.dtype)


def _pos_enc_kernel_sbd(x_ref, o_ref, *, neg_log_10000_over_d: float):
    """Batch-dedup path: x_ref/o_ref are (ts, B, D) blocks (B % 8 == 0, D % 128 == 0).

    pe is computed once per (pos, d) on a (ts, 1, D) slice and sublane-broadcast
    across the batch dim in the add -> sin count divided by B.
    """
    ts, _, dm = x_ref.shape
    d = jax.lax.broadcasted_iota(jnp.int32, (1, 1, dm), 2)
    parity = d % 2
    freq = jnp.exp((d - parity).astype(jnp.float32) * neg_log_10000_over_d)   # (1, 1, D)
    phase = (0.5 * math.pi) * parity.astype(jnp.float32)                      # (1, 1, D)
    row = jax.lax.broadcasted_iota(jnp.int32, (ts, 1, dm), 0)
    pos = (pl.program_id(0) * ts + row).astype(jnp.float32)                   # (ts, 1, D)
    pe = jnp.sin(pos * freq + phase)                                          # (ts, 1, D)
    o_ref[...] = (x_ref[...] + pe).astype(o_ref.dtype)                        # sublane-broadcast over B


def positional_encoding_forward(
    x: jnp.ndarray, *, tile_bytes: int = 2 * 1024 * 1024, inplace: bool = False
) -> jnp.ndarray:
    """x: (S, B, D) (nn.Transformer-style layout). Returns x + pe[:S]."""
    S, B, D = x.shape
    if D % 2 != 0:
        raise ValueError("d_model must be even (matches the PyTorch PositionalEncoding buffer).")
    itemsize = jnp.dtype(x.dtype).itemsize
    sub = _sublane_multiple(x.dtype)
    neg = -math.log(10000.0) / D
    alias = {0: 0} if inplace else {}

    # --- Batch-dedup path: (ts, B, D) blocks, pe shared across B via sublane broadcast.
    use_dedup = (D % 128 == 0) and (B % 8 == 0) and (B * D * itemsize <= tile_bytes)
    if use_dedup:
        ts = min(S, max(1, tile_bytes // (B * D * itemsize)))
        kernel = functools.partial(_pos_enc_kernel_sbd, neg_log_10000_over_d=neg)
        return pl.pallas_call(
            kernel,
            out_shape=jax.ShapeDtypeStruct((S, B, D), x.dtype),
            grid_spec=pltpu.PrefetchScalarGridSpec(
                num_scalar_prefetch=0,
                grid=(pl.cdiv(S, ts),),
                in_specs=[pl.BlockSpec((ts, B, D), lambda i: (i, 0, 0))],
                out_specs=pl.BlockSpec((ts, B, D), lambda i: (i, 0, 0)),
            ),
            compiler_params=pltpu.CompilerParams(dimension_semantics=("parallel",)),
            input_output_aliases=alias,
        )(x)

    # --- Flat lane-dense path: free contiguous view (S, B*D).
    bd = B * D
    x2 = x.reshape(S, bd)
    bytes_per_row = bd * itemsize
    if bytes_per_row * sub <= tile_bytes:
        # Row tiling only; last dim is full-extent (no column grid axis needed).
        tbd = bd
        rows = tile_bytes // bytes_per_row
        ts = min(S, max(sub, (rows // sub) * sub))
    else:
        # Huge B*D: also tile the lane dim in multiples of 128 so double-buffered
        # in+out tiles stay within the default scoped-VMEM limits (v7x guard).
        ts = min(S, sub)
        lanes = max(128, ((tile_bytes // (ts * itemsize)) // 128) * 128)
        tbd = min(bd, lanes)

    kernel = functools.partial(_pos_enc_kernel_flat, d_model=D, neg_log_10000_over_d=neg)
    out2 = pl.pallas_call(
        kernel,
        out_shape=jax.ShapeDtypeStruct((S, bd), x.dtype),
        grid_spec=pltpu.PrefetchScalarGridSpec(
            num_scalar_prefetch=0,
            grid=(pl.cdiv(S, ts), pl.cdiv(bd, tbd)),
            in_specs=[pl.BlockSpec((ts, tbd), lambda i, j: (i, j))],
            out_specs=pl.BlockSpec((ts, tbd), lambda i, j: (i, j)),
        ),
        compiler_params=pltpu.CompilerParams(dimension_semantics=("parallel", "parallel")),
        input_output_aliases=alias,
    )(x2)
    return out2.reshape(S, B, D)


if __name__ == "__main__":
    # Path 1 (flat lane-dense slab): small d_model not 128-aligned.
    S, B, D = 8, 2, 32
    x = jax.random.normal(jax.random.PRNGKey(0), (S, B, D), dtype=jnp.float32)
    out = jax.block_until_ready(positional_encoding_forward(x))
    ref = x + _make_pe(D)[:S]
    assert out.shape == (S, B, D)
    assert jnp.allclose(out, ref, atol=1e-4, rtol=1e-4), "flat-path mismatch vs reference"

    # Path 2 (batch-dedup, sublane-broadcast pe): lane/sublane-aligned shapes.
    S2, B2, D2 = 64, 8, 128
    x2 = jax.random.normal(jax.random.PRNGKey(1), (S2, B2, D2), dtype=jnp.float32)
    out2 = jax.block_until_ready(positional_encoding_forward(x2))
    ref2 = x2 + _make_pe(D2)[:S2]
    assert out2.shape == (S2, B2, D2)
    assert jnp.allclose(out2, ref2, atol=1e-4, rtol=1e-4), "dedup-path mismatch vs reference"

    print("KERNEL_OK")
</pallas_src>

<mosaic_0001>
module attributes {stable_mosaic.version = 11 : i64} {
  func.func @_pos_enc_kernel_flat(%arg0: i32, %arg1: i32, %arg2: memref<8x64xf32, #tpu.memory_space<vmem>>, %arg3: memref<8x64xf32, #tpu.memory_space<vmem>>) attributes {dimension_semantics = [#tpu.dimension_semantics<parallel>, #tpu.dimension_semantics<parallel>], iteration_bounds = array<i64: 1, 1>, scalar_prefetch = 0 : i64, scratch_operands = 0 : i64, tpu.core_type = #tpu.core_type<tc>, window_params = [{transform_indices = @transform_0, window_bounds = array<i64: 8, 64>}, {transform_indices = @transform_1, window_bounds = array<i64: 8, 64>}]} {
    %c64_i32 = arith.constant 64 : i32
    %0 = arith.muli %arg1, %c64_i32 : i32
    %1 = tpu.iota {dimensions = array<i32: 1>} : vector<1x64xi32>
    %2 = vector.broadcast %0 : i32 to vector<1x64xi32>
    %3 = arith.addi %2, %1 : vector<1x64xi32>
    %c32_i32 = arith.constant 32 : i32
    %c0_i32 = arith.constant 0 : i32
    %4 = arith.cmpi eq, %c32_i32, %c0_i32 : i32
    %c1_i32 = arith.constant 1 : i32
    %5 = arith.select %4, %c1_i32, %c32_i32 : i32
    %6 = vector.broadcast %5 : i32 to vector<1x64xi32>
    %7 = arith.remsi %3, %6 : vector<1x64xi32>
    %c0_i32_0 = arith.constant 0 : i32
    %8 = vector.broadcast %c0_i32_0 : i32 to vector<1x64xi32>
    %9 = arith.cmpi ne, %7, %8 : vector<1x64xi32>
    %c0_i32_1 = arith.constant 0 : i32
    %10 = vector.broadcast %c0_i32_1 : i32 to vector<1x64xi32>
    %11 = arith.cmpi slt, %7, %10 : vector<1x64xi32>
    %c0_i32_2 = arith.constant 0 : i32
    %12 = arith.cmpi slt, %5, %c0_i32_2 : i32
    %13 = vector.broadcast %12 : i1 to vector<1x64xi1>
    %14 = vector.broadcast %13 : vector<1x64xi1> to vector<1x64xi1>
    %15 = arith.xori %11, %14 : vector<1x64xi1>
    %16 = arith.andi %15, %9 : vector<1x64xi1>
    %17 = vector.broadcast %5 : i32 to vector<1x64xi32>
    %18 = arith.addi %7, %17 : vector<1x64xi32>
    %19 = arith.select %16, %18, %7 : vector<1x64xi1>, vector<1x64xi32>
    %c2_i32 = arith.constant 2 : i32
    %c0_i32_3 = arith.constant 0 : i32
    %20 = arith.cmpi eq, %c2_i32, %c0_i32_3 : i32
    %c1_i32_4 = arith.constant 1 : i32
    %21 = arith.select %20, %c1_i32_4, %c2_i32 : i32
    %22 = vector.broadcast %21 : i32 to vector<1x64xi32>
    %23 = arith.remsi %19, %22 : vector<1x64xi32>
    %c0_i32_5 = arith.constant 0 : i32
    %24 = vector.broadcast %c0_i32_5 : i32 to vector<1x64xi32>
    %25 = arith.cmpi ne, %23, %24 : vector<1x64xi32>
    %c0_i32_6 = arith.constant 0 : i32
    %26 = vector.broadcast %c0_i32_6 : i32 to vector<1x64xi32>
    %27 = arith.cmpi slt, %23, %26 : vector<1x64xi32>
    %c0_i32_7 = arith.constant 0 : i32
    %28 = arith.cmpi slt, %21, %c0_i32_7 : i32
    %29 = vector.broadcast %28 : i1 to vector<1x64xi1>
    %30 = vector.broadcast %29 : vector<1x64xi1> to vector<1x64xi1>
    %31 = arith.xori %27, %30 : vector<1x64xi1>
    %32 = arith.andi %31, %25 : vector<1x64xi1>
    %33 = vector.broadcast %21 : i32 to vector<1x64xi32>
    %34 = arith.addi %23, %33 : vector<1x64xi32>
    %35 = arith.select %32, %34, %23 : vector<1x64xi1>, vector<1x64xi32>
    %36 = arith.subi %19, %35 : vector<1x64xi32>
    %37 = arith.sitofp %36 : vector<1x64xi32> to vector<1x64xf32>
    %cst = arith.constant -0.287823141 : f32
    %38 = vector.broadcast %cst : f32 to vector<1x64xf32>
    %39 = arith.mulf %37, %38 : vector<1x64xf32>
    %40 = math.exp %39 : vector<1x64xf32>
    %41 = arith.sitofp %35 : vector<1x64xi32> to vector<1x64xf32>
    %cst_8 = arith.constant 1.57079637 : f32
    %42 = vector.broadcast %cst_8 : f32 to vector<1x64xf32>
    %43 = arith.mulf %42, %41 : vector<1x64xf32>
    %44 = tpu.iota {dimensions = array<i32: 0>} : vector<8x1xi32>
    %c8_i32 = arith.constant 8 : i32
    %45 = arith.muli %arg0, %c8_i32 : i32
    %46 = vector.broadcast %45 : i32 to vector<8x1xi32>
    %47 = arith.addi %46, %44 : vector<8x1xi32>
    %48 = arith.sitofp %47 : vector<8x1xi32> to vector<8x1xf32>
    %49 = vector.broadcast %48 : vector<8x1xf32> to vector<8x64xf32>
    %50 = vector.broadcast %40 : vector<1x64xf32> to vector<8x64xf32>
    %51 = arith.mulf %49, %50 : vector<8x64xf32>
    %52 = vector.broadcast %43 : vector<1x64xf32> to vector<8x64xf32>
    %53 = arith.addf %51, %52 : vector<8x64xf32>
    %54 = math.sin %53 : vector<8x64xf32>
    %c0 = arith.constant 0 : index
    %c0_9 = arith.constant 0 : index
    %55 = vector.load %arg2[%c0, %c0_9] : memref<8x64xf32, #tpu.memory_space<vmem>>, vector<8x64xf32>
    %56 = arith.addf %55, %54 : vector<8x64xf32>
    %c0_10 = arith.constant 0 : index
    %c0_11 = arith.constant 0 : index
    %57 = vector.load %arg3[%c0_10, %c0_11] : memref<8x64xf32, #tpu.memory_space<vmem>>, vector<8x64xf32>
    tpu.vector_store %arg3[%c0_10, %c0_11], %56 {strides = array<i32>} : memref<8x64xf32, #tpu.memory_space<vmem>>, vector<8x64xf32>,
    return
  }
  func.func @transform_0(%arg0: i32, %arg1: i32) -> (i32, i32) {
    %c0_i32 = arith.constant 0 : i32
    return %arg0, %arg1 : i32, i32
  }
  func.func @transform_1(%arg0: i32, %arg1: i32) -> (i32, i32) {
    %c0_i32 = arith.constant 0 : i32
    return %arg0, %arg1 : i32, i32
  }
}

</mosaic_0001>

<llo_original>
// kernel: tpu_custom_call.1
$region0: #{tpu_custom_call.1}
  #allocation0 [shape = 'u32[]', space=smem, size = 0x4, offset = 0x4, fixed_abs, tag = 'smem constant byte address 0x4 - core index']
  #allocation1 [shape = 'u32[72,128]{1,0:T(1,128)}', space=vmem, size = 0x9000, scoped, tag = 'internal scratch']
  %s0 = inlined_call_operand.hbm [shape: f32[8,64], index: 0, kind: input, shape index: {}]
  %s1 = inlined_call_operand.hbm [shape: f32[8,64], index: 1, kind: output, shape index: {}]
  %s2 = sld [smem:[#allocation0]]
  $region18: #{tpu_custom_call.1} parent=0
    _
  %s4 = ssub.s32 1, %s2
  %s5 = scalar_select 0, %s4, %s2
  $region1: #{tpu_custom_call.1} parent=0
    #allocation2 [shape = 'u8[4096]{0}', space=vmem, size = 0x1000, scoped, tag = 'input window, operand 0, single buffered']
    #allocation3 [shape = 's32[1]{0}', space=sflag, size = 0x4, scoped, tag = 'scoped memory for tpu_custom_call.1']
    #allocation4 [shape = 's32[1]{0}', space=sflag, size = 0x4, scoped, tag = 'scoped memory for tpu_custom_call.1']
    #allocation5 [shape = 'u8[4096]{0}', space=vmem, size = 0x1000, scoped, tag = 'output window, operand 0, single buffered']
    %6 = vsyncpa [#allocation3], 0
    %7 = vsyncpa [#allocation4], 0
    // Predicated region
    $region2: #{tpu_custom_call.1} parent=1 // pred_check
      _
    $region3: #{tpu_custom_call.1} parent=1 // pred_check_branch
      %9 = sbr.rel (0) target = $region5
    $region4: #{tpu_custom_call.1} parent=1 // pred_region
      %11 = vsyncadd [#allocation3], 0
      %s13 = sshll.u32 %s0, 4
      %s14 = int_to_ptr.hbm [resolvable:$true] %s13
      %s15 = sshll.u32 [#allocation2], 4
      %s16 = int_to_ptr.vmem [resolvable:$true] %s15
      %18 = dma.hbm_to_vmem [thread:$0]  %s14, 128, %s16, [#allocation3]
    $region5: #{tpu_custom_call.1} parent=1 // pred_fallthru
      _
    // Predicated region
    $region6: #{tpu_custom_call.1} parent=1 // pred_check
      _
    $region7: #{tpu_custom_call.1} parent=1 // pred_check_branch
      %20 = sbr.rel (0) target = $region9
    $region8: #{tpu_custom_call.1} parent=1 // pred_region
      %22 = dma.done [#allocation3], 128
    $region9: #{tpu_custom_call.1} parent=1 // pred_fallthru
      _
    %s23 = smul.u32 0, 64
    %v24 = vlaneseq
    %v25 = vand.u32 %v24, 127
    %v26 = vstv %s23
    %v27 = vadd.s32 %v26, %v25
    %vm28 = vcmp.lt.s32.totalorder %v27, 0
    %v29 = vsub.s32 0, %v27
    %v30 = vsel %vm28, %v29, %v27
    %v31 = vshrl.u32 %v30, 5
    %v32 = vand.u32 %v30, 31
    %v33 = vsub.s32 0, %v32
    %v34 = vsel %vm28, %v33, %v32
    %vm35 = vcmp.ne.s32.totalorder %v34, 0
    %vm36 = vcmp.lt.s32.totalorder %v34, 0
    %vm37 = vmand %vm36, %vm35
    %v38 = vadd.s32 %v34, 32
    %v39 = vsel %vm37, %v38, %v34
    %vm40 = vcmp.lt.s32.totalorder %v39, 0
    %v41 = vsub.s32 0, %v39
    %v42 = vsel %vm40, %v41, %v39
    %v43 = vshrl.u32 %v42, 1
    %v44 = vand.u32 %v42, 1
    %v45 = vsub.s32 0, %v44
    %v46 = vsel %vm40, %v45, %v44
    %vm47 = vcmp.ne.s32.totalorder %v46, 0
    %vm48 = vcmp.lt.s32.totalorder %v46, 0
    %vm49 = vmand %vm48, %vm47
    %v50 = vadd.s32 %v46, 2
    %v51 = vsel %vm49, %v50, %v46
    %v52 = vsub.s32 %v39, %v51
    %v53 = vcvt.s32.f32 %v52
    %v54 = vmul.f32 %v53, -0.28782314
    %v55 = vmul.f32 %v54, 1.442695
    %v56 = vpow.pop %v55
    %v57 = vcvt.s32.f32 %v51
    %v58 = vmul.f32 %v57, 1.5707964
    %v59 = vlaneseq
    %v60 = vshrl.u32 %v59, 7
    %s61 = smul.u32 0, 8
    %v62 = vstv %s61
    %v63 = vadd.s32 %v62, %v60
    %v64 = vcvt.s32.f32 %v63
    %v65 = vmul.f32 %v64, %v56
    %v66 = vadd.f32 %v65, %v58
    %v67 = vand.u32 2147483647, %v66
    %vm68 = vcmp.le.f32.partialorder %v67, 0.7853982
    %vm69 = vcmp.lt.s32.totalorder %v66, 0
    %v70 = vand.u32 %v66, 2139095040
    %v71 = vshrl.u32 %v70, 23
    %v72 = vsub.s32 %v71, 127
    %v73 = vand.u32 2147483647, %v66
    %v74 = vand.u32 %v73, 8388607
    %v75 = vor.u32 %v74, 8388608
    %v76 = vsub.s32 0, %v75
    %v77 = vadd.s32 %v72, 1
    %vm78 = vcmp.gt.s32.totalorder %v77, 0
    %v79 = vsel %vm78, %v77, 0
    %v80 = vshrl.u32 %v79, 5
    %v81 = vand.u32 %v79, 31
    %v82 = vsub.s32 32, %v81
    %v83 = vshrl.u32 683565275, %v82
    %v84 = vshll.u32 683565275, %v81
    %v85 = vshrl.u32 2475754826, %v82
    %v86 = vor.u32 %v84, %v85
    %v87 = vshll.u32 2475754826, %v81
    %v88 = vshrl.u32 2131351028, %v82
    %v89 = vor.u32 %v87, %v88
    %v90 = vshll.u32 2131351028, %v81
    %v91 = vshrl.u32 2102212464, %v82
    %v92 = vor.u32 %v90, %v91
    %v93 = vshll.u32 2102212464, %v81
    %v94 = vshrl.u32 920167782, %v82
    %v95 = vor.u32 %v93, %v94
    %v96 = vshll.u32 920167782, %v81
    %v97 = vshrl.u32 1326507024, %v82
    %v98 = vor.u32 %v96, %v97
    %vm99 = vcmp.lt.s32.totalorder %v80, 1
    %vm100 = vcmp.lt.s32.totalorder %v80, 2
    %vm101 = vcmp.lt.s32.totalorder %v80, 3
    %vm102 = vcmp.lt.s32.totalorder %v80, 4
    %v103 = vsel %vm99, %v83, %v86
    %v104 = vsel %vm102, %v92, 2102212464
    %v105 = vsel %vm101, %v89, %v104
    %v106 = vsel %vm100, %v103, %v105
    %v107 = vsel %vm99, %v86, %v89
    %v108 = vsel %vm102, %v95, 920167782
    %v109 = vsel %vm101, %v92, %v108
    %v110 = vsel %vm100, %v107, %v109
    %v111 = vsel %vm99, %v89, %v92
    %v112 = vsel %vm102, %v98, 1326507024
    %v113 = vsel %vm101, %v95, %v112
    %v114 = vsel %vm100, %v111, %v113
    %v115 = vshll.u32 %v75, 8
    %v116 = vand.u32 %v115, 65535
    %v117 = vshrl.u32 %v115, 16
    %v118 = vand.u32 %v114, 65535
    %v119 = vshrl.u32 %v114, 16
    %v120 = vmul.u32 %v116, %v118
    %v121 = vmul.u32 %v116, %v119
    %v122 = vmul.u32 %v117, %v118
    %v123 = vmul.u32 %v117, %v119
    %v124 = vshll.u32 %v121, 16
    %v125 = vshrl.u32 %v121, 16
    %v126 = vshll.u32 %v122, 16
    %v127 = vshrl.u32 %v122, 16
    %vm128 = vc.u32 %v120, %v124
    %v129 = vsel %vm128, 1, 0
    %v130 = vadd.s32 %v120, %v124
    %v131 = vadd.s32 %v123, %v129
    %vm132 = vc.u32 %v130, %v126
    %v133 = vsel %vm132, 1, 0
    %v134 = vadd.s32 %v130, %v126
    %v135 = vadd.s32 %v131, %v133
    %v136 = vadd.s32 %v135, %v125
    %v137 = vadd.s32 %v136, %v127
    %v138 = vand.u32 %v115, 65535
    %v139 = vshrl.u32 %v115, 16
    %v140 = vand.u32 %v110, 65535
    %v141 = vshrl.u32 %v110, 16
    %v142 = vmul.u32 %v138, %v140
    %v143 = vmul.u32 %v138, %v141
    %v144 = vmul.u32 %v139, %v140
    %v145 = vmul.u32 %v139, %v141
    %v146 = vshll.u32 %v143, 16
    %v147 = vshrl.u32 %v143, 16
    %v148 = vshll.u32 %v144, 16
    %v149 = vshrl.u32 %v144, 16
    %vm150 = vc.u32 %v142, %v146
    %v151 = vsel %vm150, 1, 0
    %v152 = vadd.s32 %v142, %v146
    %v153 = vadd.s32 %v145, %v151
    %vm154 = vc.u32 %v152, %v148
    %v155 = vsel %vm154, 1, 0
    %v156 = vadd.s32 %v152, %v148
    %v157 = vadd.s32 %v153, %v155
    %v158 = vadd.s32 %v157, %v147
    %v159 = vadd.s32 %v158, %v149
    %v160 = vmul.u32 %v115, %v106
    %v161 = vadd.s32 %v137, %v156
    %vm162 = vc.u32 %v137, %v156
    %v163 = vadd.s32 %v159, 1
    %v164 = vsel %vm162, %v163, %v159
    %v165 = vadd.s32 %v160, %v164
    %v166 = vadd.s32 %v165, 536870912
    %v167 = vshrl.u32 %v166, 30
    %v168 = vshll.u32 %v167, 30
    %v169 = vsub.s32 %v165, %v168
    %vm170 = vcmp.lt.s32.totalorder %v169, 0
    %v171 = vsub.s32 0, %v169
    %v172 = vsel %vm170, %v171, %v169
    %v173 = vclz %v172
    %v174 = vsub.s32 %v173, 2
    %vm175 = vcmp.gt.s32.totalorder 0, %v174
    %v176 = vsel %vm175, 0, %v174
    %v177 = vsub.s32 32, %v176
    %v178 = vshll.u32 %v169, %v176
    %v179 = vshrl.u32 %v161, %v177
    %v180 = vor.u32 %v178, %v179
    %v181 = vsub.s32 4294967266, %v176
    %v182 = vadd.s32 %v181, 127
    %v183 = vshll.u32 %v182, 23
    %v184 = vor.u32 4788187, %v183
    %v185 = vand.u32 2147483647, %v184
    %v187 = vcvt.s32.f32 %v180
    %v188 = vmul.f32 %v187, %v185
    %v189 = vxor.u32 %v188, 2147483648
    %v190 = vsel %vm69, %v189, %v188
    %v191 = vsub.s32 4, %v167
    %v192 = vsel %vm69, %v191, %v167
    %v193 = vsel %vm68, %v66, %v190
    %v194 = vsel %vm68, 0, %v192
    %v195 = vmul.f32 %v193, %v193
    %v196 = vmul.f32 %v195, -0.001358992
    %v197 = vadd.f32 %v196, 0.041655596
    %v198 = vmul.f32 %v195, %v197
    %v199 = vadd.f32 %v198, -0.4999988
    %v200 = vmul.f32 %v195, %v199
    %v201 = vadd.f32 1.0, %v200
    %v202 = vmul.f32 %v193, %v193
    %v203 = vmul.f32 %v202, -0.00019511016
    %v204 = vadd.f32 %v203, 0.008332121
    %v205 = vmul.f32 %v202, %v204
    %v206 = vadd.f32 %v205, -0.16666654
    %v207 = vmul.f32 %v202, %v206
    %v208 = vadd.f32 %v207, 1.0
    %v209 = vmul.f32 %v208, %v193
    %vm210 = vweird.f32 %v66
    %v211 = vadd.s32 %v194, 3
    %v212 = vand.u32 %v211, 3
    %vm213 = vcmp.lt.s32.totalorder %v212, 2
    %vm214 = vcmp.eq.s32.totalorder %v212, 0
    %v215 = vxor.u32 %v209, 2147483648
    %v216 = vsel %vm214, %v201, %v215
    %vm217 = vcmp.eq.s32.totalorder %v212, 2
    %v218 = vxor.u32 %v201, 2147483648
    %v219 = vsel %vm217, %v218, %v209
    %v220 = vsel %vm213, %v216, %v219
    %v221 = vsel %vm210, nan, %v220
    %v222 = vld [vmem:[#allocation2] sm:$0xff]
    %v223 = vadd.f32 %v222, %v221
    %vm224 = vcmask 523264
    %225 = vst.msk [vmem:[#allocation5] sm:$0xff] %vm224, %v223
    // Predicated region
    $region10: #{tpu_custom_call.1} parent=1 // pred_check
      _
    $region11: #{tpu_custom_call.1} parent=1 // pred_check_branch
      %227 = sbr.rel (0) target = $region13
    $region12: #{tpu_custom_call.1} parent=1 // pred_region
      %229 = vsyncadd [#allocation4], 0
      %s231 = sshll.u32 [#allocation5], 4
      %s232 = int_to_ptr.vmem [resolvable:$true] %s231
      %s233 = sshll.u32 %s1, 4
      %s234 = int_to_ptr.hbm [resolvable:$true] %s233
      %236 = dma.vmem_to_hbm [thread:$0]  %s232, 128, %s234, [#allocation4]
    $region13: #{tpu_custom_call.1} parent=1 // pred_fallthru
      _
    // Predicated region
    $region14: #{tpu_custom_call.1} parent=1 // pred_check
      _
    $region15: #{tpu_custom_call.1} parent=1 // pred_check_branch
      %238 = sbr.rel (0) target = $region17
    $region16: #{tpu_custom_call.1} parent=1 // pred_region
      %240 = dma.done [#allocation4], 128
    $region17: #{tpu_custom_call.1} parent=1 // pred_fallthru
      _
    %241 = vsyncpa [#allocation3], 1
    %242 = vsyncpa [#allocation4], 1

</llo_original>
